<compile_context>
chip_gen: v7x
topology: tpu7x:2x2x1
jax: 0.10.0
libtpu: 0.0.40
codegen_flags: <defaults>
</compile_context>

<pallas_src>
import functools

import jax
import jax.numpy as jnp
from jax.experimental import pallas as pl
from jax.experimental.pallas import tpu as pltpu


def _round_up(x: int, m: int) -> int:
    return ((x + m - 1) // m) * m


def _attention_kernel(y_ref, w_ref, h_ref, o_ref, yw_ref, acc_ref):
    m_idx = pl.program_id(0)

    @pl.when(m_idx == 0)
    def _init():
        # Hoist y @ W (does not depend on the M tile).  Keep it in bf16 so the
        # score matmul below feeds the MXU with bf16 operands.
        yw = jnp.dot(y_ref[...], w_ref[...], preferred_element_type=jnp.float32)
        yw_ref[...] = yw.astype(jnp.bfloat16)
        acc_ref[...] = jnp.zeros_like(acc_ref)

    h = h_ref[...]                                      # [Mt, Dp]  bf16

    # score tile = yw @ h.T, expressed as a dot_general contraction over the
    # feature axis so Mosaic never materializes a transposed copy of h.
    score = jax.lax.dot_general(
        yw_ref[...], h,
        dimension_numbers=(((1,), (1,)), ((), ())),
        preferred_element_type=jnp.float32,
    )                                                   # [N, Mt]  f32

    # Softmax over dim 0 (per column, across the N query rows).  Padded M
    # columns are harmless: their h rows are zero, so they contribute nothing
    # to the accumulator below.
    col_max = jnp.max(score, axis=0, keepdims=True)
    e = jnp.exp(score - col_max)
    denom = jnp.sum(e, axis=0, keepdims=True)
    z = e * pl.reciprocal(denom, approx=True)           # EUP vrcp -> ~free

    # a += z @ h   (bf16 MXU operands, f32 accumulation)
    acc_ref[...] += jnp.dot(
        z.astype(jnp.bfloat16), h, preferred_element_type=jnp.float32)

    @pl.when(m_idx == pl.num_programs(0) - 1)
    def _finalize():
        o_ref[...] = acc_ref[...].astype(o_ref.dtype)


@functools.partial(jax.jit, static_argnames=("m_tile",))
def attention(y: jax.Array, W: jax.Array, h: jax.Array, *, m_tile: int = 512):
    """a = softmax((y @ W) @ h.T, axis=0) @ h   via a single Pallas kernel.

    Zero padding used below is exact:
      * padding y_dim (cols of y, rows of W) only adds zero products,
      * padding h_dim (cols of W and h) adds zero score contributions and
        zero output columns (sliced off at the end),
      * padding M (rows of h) adds zero h rows -> zero contribution to a.
    The query axis N is never padded (softmax normalizes over it).
    """
    N, y_dim = y.shape
    M, h_dim = h.shape
    assert W.shape == (y_dim, h_dim)

    LANE = 128
    Kp = _round_up(y_dim, LANE)          # lane-dense contraction dim
    Dp = _round_up(h_dim, LANE)          # lane-dense feature / output dim
    Mp0 = _round_up(M, 8)
    Mt = min(m_tile, Mp0)                # single tile for small M
    Mp = _round_up(Mp0, Mt)

    # Pad + cast MXU operands to bf16 (also halves HBM->VMEM traffic).
    yb = jnp.pad(y, ((0, 0), (0, Kp - y_dim))).astype(jnp.bfloat16)
    wb = jnp.pad(W, ((0, Kp - y_dim), (0, Dp - h_dim))).astype(jnp.bfloat16)
    hb = jnp.pad(h, ((0, Mp - M), (0, Dp - h_dim))).astype(jnp.bfloat16)

    grid = (Mp // Mt,)

    out = pl.pallas_call(
        _attention_kernel,
        out_shape=jax.ShapeDtypeStruct((N, Dp), y.dtype),
        grid_spec=pltpu.PrefetchScalarGridSpec(
            num_scalar_prefetch=0,
            grid=grid,
            in_specs=[
                pl.BlockSpec((N, Kp), lambda m: (0, 0)),    # y  (whole)
                pl.BlockSpec((Kp, Dp), lambda m: (0, 0)),   # W  (whole)
                pl.BlockSpec((Mt, Dp), lambda m: (m, 0)),   # h  (M-tiled)
            ],
            out_specs=pl.BlockSpec((N, Dp), lambda m: (0, 0)),
            scratch_shapes=[
                pltpu.VMEM((N, Dp), jnp.bfloat16),   # yw = y @ W (hoisted)
                pltpu.VMEM((N, Dp), jnp.float32),    # output accumulator
            ],
        ),
        compiler_params=pltpu.CompilerParams(
            # The M axis is a reduction axis for the output accumulator.
            dimension_semantics=("arbitrary",),
        ),
    )(yb, wb, hb)

    return out[:, :h_dim]


def attention_ref_f32(y, W, h):
    score = (y @ W) @ h.T
    z = jax.nn.softmax(score, axis=0)
    return z @ h


def attention_ref_matched(y, W, h):
    """Reference at the kernel's precision (bf16 MXU operands, f32 accum)."""
    f32 = jnp.float32
    yb = y.astype(jnp.bfloat16).astype(f32)
    wb = W.astype(jnp.bfloat16).astype(f32)
    hb = h.astype(jnp.bfloat16).astype(f32)
    yw = (yb @ wb).astype(jnp.bfloat16).astype(f32)
    score = yw @ hb.T
    z = jax.nn.softmax(score, axis=0).astype(jnp.bfloat16).astype(f32)
    return z @ hb


if __name__ == "__main__":
    # Small shapes consistent with the module's forward:
    #   N = 8 query rows, M = 8 key/value rows, y_dim = 32, h_dim = 32
    N, M, y_dim, h_dim = 8, 8, 32, 32

    key = jax.random.PRNGKey(0)
    ky, kh, kw = jax.random.split(key, 3)
    y = jax.random.normal(ky, (N, y_dim), dtype=jnp.float32)
    h = jax.random.normal(kh, (M, h_dim), dtype=jnp.float32)
    # Deterministic parameter init (torch.FloatTensor is uninitialized memory;
    # a fixed random normal is used instead).
    W = jax.random.normal(kw, (y_dim, h_dim), dtype=jnp.float32) * 0.1

    out = attention(y, W, h)
    jax.block_until_ready(out)
    assert out.shape == (N, h_dim)

    # Tight check against a reference at the same (bf16-operand) precision.
    ref_m = attention_ref_matched(y, W, h)
    assert jnp.allclose(out, ref_m, atol=2e-2, rtol=2e-2), \
        "mismatch vs matched-precision reference"

    # Loose sanity check against the pure-f32 reference (bf16 MXU rounding).
    ref32 = attention_ref_f32(y, W, h)
    assert jnp.allclose(out, ref32, atol=0.25, rtol=0.25), \
        "mismatch vs f32 reference"

    print("KERNEL_OK")
</pallas_src>

<mosaic_0001>
module attributes {stable_mosaic.version = 11 : i64} {
  func.func @_attention_kernel(%arg0: i32, %arg1: memref<8x128xbf16, #tpu.memory_space<vmem>>, %arg2: memref<128x128xbf16, #tpu.memory_space<vmem>>, %arg3: memref<8x128xbf16, #tpu.memory_space<vmem>>, %arg4: memref<8x128xf32, #tpu.memory_space<vmem>>, %arg5: memref<8x128xbf16, #tpu.memory_space<vmem>>, %arg6: memref<8x128xf32, #tpu.memory_space<vmem>>) attributes {dimension_semantics = [#tpu.dimension_semantics<arbitrary>], iteration_bounds = array<i64: 1>, scalar_prefetch = 0 : i64, scratch_operands = 2 : i64, tpu.core_type = #tpu.core_type<tc>, window_params = [{pipeline_mode = #tpu.pipeline_mode<synchronous>, transform_indices = @transform_0, window_bounds = array<i64: 8, 128>}, {pipeline_mode = #tpu.pipeline_mode<synchronous>, transform_indices = @transform_1, window_bounds = array<i64: 128, 128>}, {transform_indices = @transform_2, window_bounds = array<i64: 8, 128>}, {pipeline_mode = #tpu.pipeline_mode<synchronous>, transform_indices = @transform_3, window_bounds = array<i64: 8, 128>}]} {
    %c0_i32 = arith.constant 0 : i32
    %0 = arith.cmpi eq, %arg0, %c0_i32 : i32
    %1 = arith.extui %0 : i1 to i32
    %c0_i32_0 = arith.constant 0 : i32
    %2 = arith.cmpi ne, %1, %c0_i32_0 : i32
    scf.if %2 {
      %c0_13 = arith.constant 0 : index
      %c0_14 = arith.constant 0 : index
      %24 = vector.load %arg1[%c0_13, %c0_14] : memref<8x128xbf16, #tpu.memory_space<vmem>>, vector<8x128xbf16>
      %c0_15 = arith.constant 0 : index
      %c0_16 = arith.constant 0 : index
      %25 = vector.load %arg2[%c0_15, %c0_16] : memref<128x128xbf16, #tpu.memory_space<vmem>>, vector<128x128xbf16>
      %cst_17 = arith.constant dense<0.000000e+00> : vector<8x128xf32>
      %26 = tpu.matmul %24, %25, %cst_17 {dimension_numbers = #tpu.dot_dimension_numbers<[1], [0], [0], [1], [0, 0, 1, 1], [], []>} : vector<8x128xbf16>, vector<128x128xbf16>, vector<8x128xf32> -> vector<8x128xf32>
      %27 = arith.truncf %26 : vector<8x128xf32> to vector<8x128xbf16>
      %c0_18 = arith.constant 0 : index
      %c0_19 = arith.constant 0 : index
      %28 = vector.load %arg5[%c0_18, %c0_19] : memref<8x128xbf16, #tpu.memory_space<vmem>>, vector<8x128xbf16>
      tpu.vector_store %arg5[%c0_18, %c0_19], %27 {strides = array<i32>} : memref<8x128xbf16, #tpu.memory_space<vmem>>, vector<8x128xbf16>,
      %cst_20 = arith.constant 0.000000e+00 : f32
      %29 = vector.broadcast %cst_20 : f32 to vector<8x128xf32>
      %c0_21 = arith.constant 0 : index
      %c0_22 = arith.constant 0 : index
      %30 = vector.load %arg6[%c0_21, %c0_22] : memref<8x128xf32, #tpu.memory_space<vmem>>, vector<8x128xf32>
      tpu.vector_store %arg6[%c0_21, %c0_22], %29 {strides = array<i32>} : memref<8x128xf32, #tpu.memory_space<vmem>>, vector<8x128xf32>,
    } else {
    }
    %c0 = arith.constant 0 : index
    %c0_1 = arith.constant 0 : index
    %3 = vector.load %arg3[%c0, %c0_1] : memref<8x128xbf16, #tpu.memory_space<vmem>>, vector<8x128xbf16>
    %c0_2 = arith.constant 0 : index
    %c0_3 = arith.constant 0 : index
    %4 = vector.load %arg5[%c0_2, %c0_3] : memref<8x128xbf16, #tpu.memory_space<vmem>>, vector<8x128xbf16>
    %cst = arith.constant dense<0.000000e+00> : vector<8x8xf32>
    %5 = tpu.matmul %4, %3, %cst {dimension_numbers = #tpu.dot_dimension_numbers<[1], [1], [0], [0], [0, 0, 1, 0], [], []>} : vector<8x128xbf16>, vector<8x128xbf16>, vector<8x8xf32> -> vector<8x8xf32>
    %cst_4 = arith.constant dense<0xFF800000> : vector<8xf32>
    %6 = vector.multi_reduction <maximumf>, %5, %cst_4 [0] : vector<8x8xf32> to vector<8xf32>
    %7 = vector.shape_cast %6 : vector<8xf32> to vector<1x8xf32>
    %8 = vector.broadcast %7 : vector<1x8xf32> to vector<8x8xf32>
    %9 = arith.subf %5, %8 : vector<8x8xf32>
    %10 = math.exp %9 : vector<8x8xf32>
    %cst_5 = arith.constant dense<0.000000e+00> : vector<8xf32>
    %11 = vector.multi_reduction <add>, %10, %cst_5 [0] : vector<8x8xf32> to vector<8xf32>
    %12 = vector.shape_cast %11 : vector<8xf32> to vector<1x8xf32>
    %13 = tpu.reciprocal %12 {approx = true} : vector<1x8xf32> -> vector<1x8xf32>
    %14 = vector.broadcast %13 : vector<1x8xf32> to vector<8x8xf32>
    %15 = arith.mulf %10, %14 : vector<8x8xf32>
    %c0_6 = arith.constant 0 : index
    %c0_7 = arith.constant 0 : index
    %16 = vector.load %arg6[%c0_6, %c0_7] : memref<8x128xf32, #tpu.memory_space<vmem>>, vector<8x128xf32>
    %17 = arith.truncf %15 : vector<8x8xf32> to vector<8x8xbf16>
    %cst_8 = arith.constant dense<0.000000e+00> : vector<8x128xf32>
    %18 = tpu.matmul %17, %3, %cst_8 {dimension_numbers = #tpu.dot_dimension_numbers<[1], [0], [0], [1], [0, 0, 1, 1], [], []>} : vector<8x8xbf16>, vector<8x128xbf16>, vector<8x128xf32> -> vector<8x128xf32>
    %19 = arith.addf %16, %18 : vector<8x128xf32>
    %c0_9 = arith.constant 0 : index
    %c0_10 = arith.constant 0 : index
    %20 = vector.load %arg6[%c0_9, %c0_10] : memref<8x128xf32, #tpu.memory_space<vmem>>, vector<8x128xf32>
    tpu.vector_store %arg6[%c0_9, %c0_10], %19 {strides = array<i32>} : memref<8x128xf32, #tpu.memory_space<vmem>>, vector<8x128xf32>,
    %c0_i32_11 = arith.constant 0 : i32
    %21 = arith.cmpi eq, %arg0, %c0_i32_11 : i32
    %22 = arith.extui %21 : i1 to i32
    %c0_i32_12 = arith.constant 0 : i32
    %23 = arith.cmpi ne, %22, %c0_i32_12 : i32
    scf.if %23 {
      %c0_13 = arith.constant 0 : index
      %c0_14 = arith.constant 0 : index
      %24 = vector.load %arg6[%c0_13, %c0_14] : memref<8x128xf32, #tpu.memory_space<vmem>>, vector<8x128xf32>
      %c0_15 = arith.constant 0 : index
      %c0_16 = arith.constant 0 : index
      %25 = vector.load %arg4[%c0_15, %c0_16] : memref<8x128xf32, #tpu.memory_space<vmem>>, vector<8x128xf32>
      tpu.vector_store %arg4[%c0_15, %c0_16], %24 {strides = array<i32>} : memref<8x128xf32, #tpu.memory_space<vmem>>, vector<8x128xf32>,
    } else {
    }
    return
  }
  func.func @transform_0(%arg0: i32) -> (i32, i32) {
    %c0_i32 = arith.constant 0 : i32
    %c0_i32_0 = arith.constant 0 : i32
    %c0_i32_1 = arith.constant 0 : i32
    return %c0_i32, %c0_i32_0 : i32, i32
  }
  func.func @transform_1(%arg0: i32) -> (i32, i32) {
    %c0_i32 = arith.constant 0 : i32
    %c0_i32_0 = arith.constant 0 : i32
    %c0_i32_1 = arith.constant 0 : i32
    return %c0_i32, %c0_i32_0 : i32, i32
  }
  func.func @transform_2(%arg0: i32) -> (i32, i32) {
    %c0_i32 = arith.constant 0 : i32
    %c0_i32_0 = arith.constant 0 : i32
    return %arg0, %c0_i32 : i32, i32
  }
  func.func @transform_3(%arg0: i32) -> (i32, i32) {
    %c0_i32 = arith.constant 0 : i32
    %c0_i32_0 = arith.constant 0 : i32
    %c0_i32_1 = arith.constant 0 : i32
    return %c0_i32, %c0_i32_0 : i32, i32
  }
}

</mosaic_0001>

<llo_original>
// kernel: attention.1
$region0: #{attention.1}
  #allocation0 [shape = 'u32[]', space=smem, size = 0x4, offset = 0x4, fixed_abs, tag = 'smem constant byte address 0x4 - core index']
  #allocation1 [shape = 'u32[144,128]{1,0:T(1,128)}', space=vmem, size = 0x12000, scoped, tag = 'internal scratch']
  #allocation2 [shape = 'bf16[8,128]{1,0:T(8,128)(2,1)}', space=vmem, size = 0x800, scoped, tag = 'scratch operand']
  #allocation3 [shape = 'f32[8,128]{1,0:T(8,128)}', space=vmem, size = 0x1000, scoped, tag = 'scratch operand']
  %s0 = inlined_call_operand.vmem [shape: bf16[8,128], index: 0, kind: input, shape index: {}]
  %s1 = inlined_call_operand.vmem [shape: bf16[128,128], index: 1, kind: input, shape index: {}]
  %s2 = inlined_call_operand.vmem [shape: bf16[8,128], index: 2, kind: input, shape index: {}]
  %s3 = inlined_call_operand.hbm [shape: f32[8,128], index: 3, kind: output, shape index: {}]
  %s4 = sld [smem:[#allocation0]]
  $region30: #{attention.1} parent=0
    _
  %s6 = ssub.s32 1, %s4
  %s7 = scalar_select 0, %s6, %s4
  $region1: #{attention.1} parent=0
    #allocation4 [shape = 'u8[4096]{0}', space=vmem, size = 0x1000, scoped, tag = 'output window, operand 0, single buffered']
    #allocation5 [shape = 's32[1]{0}', space=sflag, size = 0x4, scoped, tag = 'scoped memory for attention.1']
    %8 = vsyncpa [#allocation5], 0
    // Predicated region
    $region2: #{attention.1} parent=1 // pred_check
      _
    $region3: #{attention.1} parent=1 // pred_check_branch
      %10 = sbr.rel (0) target = $region5
    $region4: #{attention.1} parent=1 // pred_region
      _
    $region5: #{attention.1} parent=1 // pred_fallthru
      _
    // Predicated region
    $region6: #{attention.1} parent=1 // pred_check
      _
    $region7: #{attention.1} parent=1 // pred_check_branch
      %12 = sbr.rel (0) target = $region9
    $region8: #{attention.1} parent=1 // pred_region
      _
    $region9: #{attention.1} parent=1 // pred_fallthru
      _
    // Predicated region
    $region10: #{attention.1} parent=1 // pred_check
      _
    $region11: #{attention.1} parent=1 // pred_check_branch
      %14 = sbr.rel (0) target = $region13
    $region12: #{attention.1} parent=1 // pred_region
      _
    $region13: #{attention.1} parent=1 // pred_fallthru
      _
    %p16 = scmp.eq.s32.totalorder 0, 0
    // Predicated region
    $region14: #{attention.1} parent=1 // pred_check
      %p17 = pneg %p16
    $region15: #{attention.1} parent=1 // pred_check_branch
      %19 = sbr.rel (%p17) target = $region17
    $region16: #{attention.1} parent=1 // pred_region
      %v20 = vld [vmem:[%s0] sm:$0xf]
      %v21 = vld [vmem:[%s1] sm:$0xf]
      %v22 = vld [vmem:[%s1 + $0x4] sm:$0xf]
      %v23 = vld [vmem:[%s1 + $0x8] sm:$0xf]
      %v24 = vld [vmem:[%s1 + $0xc] sm:$0xf]
      %v25 = vld [vmem:[%s1 + $0x10] sm:$0xf]
      %v26 = vld [vmem:[%s1 + $0x14] sm:$0xf]
      %v27 = vld [vmem:[%s1 + $0x18] sm:$0xf]
      %v28 = vld [vmem:[%s1 + $0x1c] sm:$0xf]
      %v29 = vld [vmem:[%s1 + $0x20] sm:$0xf]
      %v30 = vld [vmem:[%s1 + $0x24] sm:$0xf]
      %v31 = vld [vmem:[%s1 + $0x28] sm:$0xf]
      %v32 = vld [vmem:[%s1 + $0x2c] sm:$0xf]
      %v33 = vld [vmem:[%s1 + $0x30] sm:$0xf]
      %v34 = vld [vmem:[%s1 + $0x34] sm:$0xf]
      %v35 = vld [vmem:[%s1 + $0x38] sm:$0xf]
      %v36 = vld [vmem:[%s1 + $0x3c] sm:$0xf]
      %v53 = vunpack.c.l.b16 %v21
      %v54 = vunpack.c.l.b16 %v22
      %v55 = vunpack.c.l.b16 %v23
      %v56 = vunpack.c.l.b16 %v24
      %v57 = vunpack.c.l.b16 %v25
      %v58 = vunpack.c.l.b16 %v26
      %v59 = vunpack.c.l.b16 %v27
      %v60 = vunpack.c.l.b16 %v28
      %v61 = vunpack.c.l.b16 %v29
      %v62 = vunpack.c.l.b16 %v30
      %v63 = vunpack.c.l.b16 %v31
      %v64 = vunpack.c.l.b16 %v32
      %v65 = vunpack.c.l.b16 %v33
      %v66 = vunpack.c.l.b16 %v34
      %v67 = vunpack.c.l.b16 %v35
      %v68 = vunpack.c.l.b16 %v36
      %v69 = vpack.c.b16 %v54, %v53
      %v70 = vpack.c.b16 %v56, %v55
      %v71 = vpack.c.b16 %v58, %v57
      %v72 = vpack.c.b16 %v60, %v59
      %v73 = vpack.c.b16 %v62, %v61
      %v74 = vpack.c.b16 %v64, %v63
      %v75 = vpack.c.b16 %v66, %v65
      %v76 = vpack.c.b16 %v68, %v67
      %85 = vmatprep.subr.bf16.mxu0 0
      %86 = vmatpush1.bf16.msra.mxu0 %v69
      %87 = vmatprep.subr.bf16.mxu0 0
      %88 = vmatpush1.bf16.msra.mxu0 %v70
      %89 = vmatprep.subr.bf16.mxu0 0
      %90 = vmatpush1.bf16.msra.mxu0 %v71
      %91 = vmatprep.subr.bf16.mxu0 0
      %92 = vmatpush1.bf16.msra.mxu0 %v72
      %93 = vmatprep.subr.bf16.mxu0 0
      %94 = vmatpush1.bf16.msra.mxu0 %v73
      %95 = vmatprep.subr.bf16.mxu0 0
      %96 = vmatpush1.bf16.msra.mxu0 %v74
      %97 = vmatprep.subr.bf16.mxu0 0
      %98 = vmatpush1.bf16.msra.mxu0 %v75
      %99 = vmatprep.subr.bf16.mxu0 0
      %100 = vmatpush1.bf16.msra.mxu0 %v76
      %101 = vmatprep.subr.bf16.mxu0 0
      %102 = vmatpush1.bf16.msra.mxu0 0
      %103 = vmatprep.subr.bf16.mxu0 0
      %104 = vmatpush1.bf16.msra.mxu0 0
      %105 = vmatprep.subr.bf16.mxu0 0
      %106 = vmatpush1.bf16.msra.mxu0 0
      %107 = vmatprep.subr.bf16.mxu0 0
      %108 = vmatpush1.bf16.msra.mxu0 0
      %109 = vmatprep.subr.bf16.mxu0 0
      %110 = vmatpush1.bf16.msra.mxu0 0
      %111 = vmatprep.subr.bf16.mxu0 0
      %112 = vmatpush1.bf16.msra.mxu0 0
      %113 = vmatprep.subr.bf16.mxu0 0
      %114 = vmatpush1.bf16.msra.mxu0 0
      %115 = vmatprep.subr.bf16.mxu0 0
      %116 = vmatpush1.bf16.msra.mxu0 0
      %117 = vmatprep.mubr.bf16.mxu0 0
      %118 = vmatmul.mubr.bf16.gmra.mrb[0].mxu0 %v20
      %v119 = vpop.f32.mrb[0].mxu0
      %v120 = vadd.f32 0.0, %v119
      %v121 = vpop.f32.mrb[0].mxu0
      %v122 = vpop.f32.mrb[0].mxu0
      %v123 = vpop.f32.mrb[0].mxu0
      %124 = vdwg.mxu0
      %v125 = vpack.c.bf16 %v120, %v120
      %126 = vst [vmem:[#allocation2] sm:$0xf] %v125
      %127 = vst [vmem:[#allocation3] sm:$0xff] 0.0
    $region17: #{attention.1} parent=1 // pred_fallthru
      _
    %v128 = vld [vmem:[%s2] sm:$0xf]
    %v129 = vld [vmem:[#allocation2] sm:$0xf]
    %130 = vmatprep.subr.bf16.mxu0 0
    %131 = vmatpush1.bf16.xpose.msra.mxu0 %v128
    %132 = vmatprep.subr.bf16.mxu0 0
    %133 = vmatpush1.bf16.xpose.msra.mxu0 0
    %134 = vmatprep.subr.bf16.mxu0 0
    %135 = vmatpush1.bf16.xpose.msra.mxu0 0
    %136 = vmatprep.subr.bf16.mxu0 0
    %137 = vmatpush1.bf16.xpose.msra.mxu0 0
    %138 = vmatprep.subr.bf16.mxu0 0
    %139 = vmatpush1.bf16.xpose.msra.mxu0 0
    %140 = vmatprep.subr.bf16.mxu0 0
    %141 = vmatpush1.bf16.xpose.msra.mxu0 0
    %142 = vmatprep.subr.bf16.mxu0 0
    %143 = vmatpush1.bf16.xpose.msra.mxu0 0
    %144 = vmatprep.subr.bf16.mxu0 0
    %145 = vmatpush1.bf16.xpose.msra.mxu0 0
    %146 = vmatprep.subr.bf16.mxu0 0
    %147 = vmatpush1.bf16.xpose.msra.mxu0 0
    %148 = vmatprep.subr.bf16.mxu0 0
    %149 = vmatpush1.bf16.xpose.msra.mxu0 0
    %150 = vmatprep.subr.bf16.mxu0 0
    %151 = vmatpush1.bf16.xpose.msra.mxu0 0
    %152 = vmatprep.subr.bf16.mxu0 0
    %153 = vmatpush1.bf16.xpose.msra.mxu0 0
    %154 = vmatprep.subr.bf16.mxu0 0
    %155 = vmatpush1.bf16.xpose.msra.mxu0 0
    %156 = vmatprep.subr.bf16.mxu0 0
    %157 = vmatpush1.bf16.xpose.msra.mxu0 0
    %158 = vmatprep.subr.bf16.mxu0 0
    %159 = vmatpush1.bf16.xpose.msra.mxu0 0
    %160 = vmatprep.subr.bf16.mxu0 0
    %161 = vmatpush1.bf16.xpose.msra.mxu0 0
    %162 = vmatprep.mubr.bf16.mxu0 0
    %163 = vmatmul.mubr.bf16.gmra.mrb[0].mxu0 %v129
    %v164 = vpop.f32.mrb[0].mxu0
    %v165 = vadd.f32 0.0, %v164
    %v166 = vpop.f32.mrb[0].mxu0
    %v167 = vpop.f32.mrb[0].mxu0
    %v168 = vpop.f32.mrb[0].mxu0
    %169 = vdwg.mxu0
    %vm170 = vcmask 64512
    %v171 = vsel %vm170, %v165, -inf
    %v172 = vrot.slane %v171, 4
    %v173 = vmax.f32 %v171, %v172
    %v174 = vrot.slane %v173, 2
    %v175 = vmax.f32 %v173, %v174
    %v176 = vrot.slane %v175, 1
    %v177 = vmax.f32 %v175, %v176
    %v178 = vsub.f32 %v165, %v177
    %v179 = vmul.f32 %v178, 1.442695
    %v180 = vpow.pop %v179
    %v181 = vsel %vm170, %v180, 0.0
    %v182 = vrot.slane %v181, 4
    %v183 = vadd.f32 %v181, %v182
    %v184 = vrot.slane %v183, 2
    %v185 = vadd.f32 %v183, %v184
    %v186 = vrot.slane %v185, 1
    %v187 = vadd.f32 %v185, %v186
    %v188 = vrcp.pop %v187
    %v189 = vmul.f32 %v180, %v188
    %v190 = vld [vmem:[#allocation3] sm:$0xff]
    %v191 = vpack.c.bf16 %v189, %v189
    %v193 = vsel %vm170, %v191, 0
    %vm195 = vcmask 1043456
    %v197 = vsel %vm195, %v128, 0
    %199 = vmatprep.subr.bf16.mxu0 0
    %200 = vmatpush1.bf16.msra.mxu0 %v197
    %201 = vmatprep.subr.bf16.mxu0 0
    %202 = vmatpush1.bf16.msra.mxu0 0
    %203 = vmatprep.subr.bf16.mxu0 0
    %204 = vmatpush1.bf16.msra.mxu0 0
    %205 = vmatprep.subr.bf16.mxu0 0
    %206 = vmatpush1.bf16.msra.mxu0 0
    %207 = vmatprep.subr.bf16.mxu0 0
    %208 = vmatpush1.bf16.msra.mxu0 0
    %209 = vmatprep.subr.bf16.mxu0 0
    %210 = vmatpush1.bf16.msra.mxu0 0
    %211 = vmatprep.subr.bf16.mxu0 0
    %212 = vmatpush1.bf16.msra.mxu0 0
    %213 = vmatprep.subr.bf16.mxu0 0
    %214 = vmatpush1.bf16.msra.mxu0 0
    %215 = vmatprep.subr.bf16.mxu0 0
    %216 = vmatpush1.bf16.msra.mxu0 0
    %217 = vmatprep.subr.bf16.mxu0 0
    %218 = vmatpush1.bf16.msra.mxu0 0
    %219 = vmatprep.subr.bf16.mxu0 0
    %220 = vmatpush1.bf16.msra.mxu0 0
    %221 = vmatprep.subr.bf16.mxu0 0
    %222 = vmatpush1.bf16.msra.mxu0 0
    %223 = vmatprep.subr.bf16.mxu0 0
    %224 = vmatpush1.bf16.msra.mxu0 0
    %225 = vmatprep.subr.bf16.mxu0 0
    %226 = vmatpush1.bf16.msra.mxu0 0
    %227 = vmatprep.subr.bf16.mxu0 0
    %228 = vmatpush1.bf16.msra.mxu0 0
    %229 = vmatprep.subr.bf16.mxu0 0
    %230 = vmatpush1.bf16.msra.mxu0 0
    %231 = vmatprep.mubr.bf16.mxu0 0
    %232 = vmatmul.mubr.bf16.gmra.mrb[0].mxu0 %v193
    %v233 = vpop.f32.mrb[0].mxu0
    %v234 = vadd.f32 0.0, %v233
    %v235 = vpop.f32.mrb[0].mxu0
    %v236 = vpop.f32.mrb[0].mxu0
    %v237 = vpop.f32.mrb[0].mxu0
    %238 = vdwg.mxu0
    %v239 = vadd.f32 %v190, %v234
    %240 = vst [vmem:[#allocation3] sm:$0xff] %v239
    // Predicated region
    $region18: #{attention.1} parent=1 // pred_check
      %p241 = pneg %p16
    $region19: #{attention.1} parent=1 // pred_check_branch
      %243 = sbr.rel (%p241) target = $region21
    $region20: #{attention.1} parent=1 // pred_region
      %v244 = vld [vmem:[#allocation3] sm:$0xff]
      %245 = vst [vmem:[#allocation4] sm:$0xff] %v244
    $region21: #{attention.1} parent=1 // pred_fallthru
      _
    // Predicated region
    $region22: #{attention.1} parent=1 // pred_check
      _
    $region23: #{attention.1} parent=1 // pred_check_branch
      %247 = sbr.rel (0) target = $region25
    $region24: #{attention.1} parent=1 // pred_region
      %s249 = ssub.s32 128, 128
      %250 = vsyncadd [#allocation5], %s249
      %s252 = sshll.u32 [#allocation4], 4
      %s253 = int_to_ptr.vmem [resolvable:$true] %s252
      %255 = dma.vmem_to_hbm [thread:$0]  %s253, 128, %s3, [#allocation5]
    $region25: #{attention.1} parent=1 // pred_fallthru
      _
    // Predicated region
    $region26: #{attention.1} parent=1 // pred_check
      _
    $region27: #{attention.1} parent=1 // pred_check_branch
      %257 = sbr.rel (0) target = $region29
    $region28: #{attention.1} parent=1 // pred_region
      %258 = dma.done [#allocation5], 128
    $region29: #{attention.1} parent=1 // pred_fallthru
      _
    %259 = vsyncpa [#allocation5], 1

</llo_original>
